<compile_context>
chip_gen: v7x
topology: tpu7x:2x2x1
jax: 0.10.0
libtpu: 0.0.40
codegen_flags: <defaults>
</compile_context>

<pallas_src>
import functools
import math

import jax
import jax.numpy as jnp
from jax import lax
from jax.experimental import pallas as pl
from jax.experimental.pallas import tpu as pltpu

ALPHA = 1.5      # entmax15
N_BISECT = 16    # halvings of the (<1 wide) tau bracket
N_NEWTON = 2     # Newton polish steps (quadratic convergence past f32 eps)


def entmax15_loss_kernel(x_ref, out_ref, *, n_bisect, n_newton):
    """Per-row entmax15 (bisection + Newton) and the p*-dependent part of the loss.

    x_ref:   (TN, D) logits block (bf16 or f32), class dim on lanes.
    out_ref: (1, 1, TN) f32:  sum(p*x) + (sum(p) - sum(p**1.5)) / (alpha*(alpha-1)).
    The remaining `-x[row, target]` term of the loss is added in the wrapper.
    """
    x = x_ref[...].astype(jnp.float32)                         # (TN, D)
    tn, d = x.shape

    # entmax15 solves p_i = [xs_i - tau]_+^2, sum(p) = 1, with xs = (x - max(x)) / 2.
    # max(xs) == 0  =>  tau* in [-1, -1/sqrt(D)], and f(tau) = sum([xs-tau]_+^2) - 1
    # is convex & decreasing with f(-1) >= 0.
    row_max = jnp.max(x, axis=-1, keepdims=True)               # (TN, 1)
    xs = (x - row_max) * 0.5                                   # only live (TN, D) buffer

    tau = jnp.full((tn, 1), -1.0, dtype=jnp.float32)
    dm0 = jnp.asarray(1.0 - 1.0 / math.sqrt(d), dtype=jnp.float32)   # bracket width

    def bisect_body(_, carry):
        tau, dm = carry
        dm = dm * 0.5
        tau_m = tau + dm
        q = jnp.maximum(xs - tau_m, 0.0)
        f_m = jnp.sum(q * q, axis=-1, keepdims=True) - 1.0
        tau = jnp.where(f_m >= 0.0, tau_m, tau)                # keep invariant f(tau) >= 0
        return tau, dm

    tau, _ = lax.fori_loop(0, n_bisect, bisect_body, (tau, dm0))

    # Newton polish: from the f >= 0 side of a convex decreasing f, iterates stay left
    # of the root (f stays >= 0) and f' = -2*sum(q) never vanishes there.
    def newton_body(_, tau):
        q = jnp.maximum(xs - tau, 0.0)
        f = jnp.sum(q * q, axis=-1, keepdims=True) - 1.0
        fp = 2.0 * jnp.sum(q, axis=-1, keepdims=True)          # = -f'(tau) > 0
        return tau + f / fp                                    # (TN,1) divide only

    tau = lax.fori_loop(0, n_newton, newton_body, tau)

    # Final pass with the renormalisation folded into per-row scalars:
    #   q = [xs - tau]_+ ,  s = sum(q^2) ,  p = q^2 / s
    #   sum(p*x)    = 2*sum(q^2*xs)/s + row_max          (since sum(p) == 1)
    #   sum(p**1.5) = sum(q^3) / (s*sqrt(s))
    q = jnp.maximum(xs - tau, 0.0)
    q2 = q * q
    s = jnp.sum(q2, axis=-1, keepdims=True)                    # (TN, 1)
    a = jnp.sum(q2 * xs, axis=-1, keepdims=True)
    b = jnp.sum(q2 * q, axis=-1, keepdims=True)

    inv_alpha = 1.0 / (ALPHA * (ALPHA - 1.0))
    inv_s = 1.0 / s                                            # per-row scalars only
    loss = 2.0 * a * inv_s + row_max + (1.0 - b * inv_s / jnp.sqrt(s)) * inv_alpha
    out_ref[...] = loss.reshape(1, 1, tn)                      # lane-dense row


def _round_up(a, b):
    return ((a + b - 1) // b) * b


def _usable_vmem_bytes():
    try:
        cap = int(getattr(pltpu.get_tpu_info(), "vmem_capacity_bytes", 64 << 20))
    except Exception:
        cap = 64 << 20
    # ~70% of physical VMEM: ~45 MiB on v7x (64 MiB), ~90 MiB on v5e/v6e (128 MiB).
    return min(int(cap * 0.7), 96 << 20)


def entmax_loss_rows(logits, target, *, block_rows=512,
                     n_bisect=N_BISECT, n_newton=N_NEWTON):
    """Per-row entmax15 loss (EntmaxLossFunction.forward, entmax_type='entmax15')."""
    n, d = logits.shape
    in_bytes = jnp.dtype(logits.dtype).itemsize

    usable = _usable_vmem_bytes()
    # Per-row VMEM estimate: double-buffered input + xs (f32) + ~2 f32 loop temporaries.
    per_row = d * (2 * in_bytes + 3 * 4) + 64
    cap = max(8, (usable // per_row) // 8 * 8)
    # Keep >= 2 grid blocks so v7x's two TensorCores both get work.
    two_core_cap = _round_up(-(-n // 2), 8)
    br = max(8, min(_round_up(block_rows, 8), _round_up(n, 8), cap, two_core_cap))
    # No jnp.pad: the edge block (if any) reads OOB garbage rows; they are sliced off.
    num_blocks = -(-n // br)

    vmem_limit = int(min(usable + (8 << 20), 112 << 20))

    loss_blocks = pl.pallas_call(
        functools.partial(entmax15_loss_kernel, n_bisect=n_bisect, n_newton=n_newton),
        out_shape=jax.ShapeDtypeStruct((num_blocks, 1, br), jnp.float32),
        grid_spec=pltpu.PrefetchScalarGridSpec(
            num_scalar_prefetch=0,
            grid=(num_blocks,),
            in_specs=[pl.BlockSpec((br, d), lambda i: (i, 0))],
            out_specs=pl.BlockSpec((1, 1, br), lambda i: (i, 0, 0)),
        ),
        compiler_params=pltpu.CompilerParams(
            dimension_semantics=("parallel",),
            vmem_limit_bytes=vmem_limit,
        ),
    )(logits)

    loss = loss_blocks.reshape(num_blocks * br)[:n]
    # sum(onehot(target) * x) == x[row, target]: gather first, cast the n scalars after
    # (no full N x D f32 copy of bf16 logits, no per-block int32 side stream).
    x_at_t = jnp.take_along_axis(
        logits, target.astype(jnp.int32)[:, None], axis=-1
    )[:, 0].astype(jnp.float32)
    return loss - x_at_t


def entmax_loss_module(logits, target, *, reduction="elementwise_mean", ignore_index=-100):
    """EntmaxLoss.forward (entmax_type='entmax15', alpha=1.5), faithful to the module."""
    loss = entmax_loss_rows(logits, target)
    # NOTE: matches the module literally — with the default ignore_index=-100 this
    # branch is skipped, so nothing is masked (same as the PyTorch code as written).
    if ignore_index >= 0:
        ignored = target == ignore_index
        size = jnp.sum(jnp.logical_not(ignored)).astype(jnp.float32)
        loss = jnp.where(ignored, 0.0, loss)
    else:
        size = float(target.shape[0])
    if reduction == "sum":
        return jnp.sum(loss)
    if reduction == "elementwise_mean":
        return jnp.sum(loss) / size
    return loss


# ------------------------- pure-JAX reference (for checking) -------------------------
def _entmax15_ref(x):
    xs = (x - jnp.max(x, axis=-1, keepdims=True)) / 2.0
    xsrt = jnp.sort(xs, axis=-1)[..., ::-1]
    d = x.shape[-1]
    rho = jnp.arange(1, d + 1, dtype=jnp.float32)
    mean = jnp.cumsum(xsrt, axis=-1) / rho
    mean_sq = jnp.cumsum(xsrt**2, axis=-1) / rho
    ss = rho * (mean_sq - mean**2)
    delta = (1.0 - ss) / rho
    tau = mean - jnp.sqrt(jnp.maximum(delta, 0.0))
    support = jnp.sum(tau <= xsrt, axis=-1)
    tau_star = jnp.take_along_axis(tau, (support - 1)[:, None], axis=-1)
    return jnp.maximum(xs - tau_star, 0.0) ** 2


def _entmax_loss_ref(x, t):
    p = _entmax15_ref(x)
    onehot = jax.nn.one_hot(t, x.shape[-1], dtype=jnp.float32)
    loss = jnp.sum((p - onehot) * x, axis=-1) + jnp.sum(p - p**ALPHA, axis=-1) / (
        ALPHA * (ALPHA - 1.0)
    )
    return jnp.sum(loss) / x.shape[0]


if __name__ == "__main__":
    key = jax.random.PRNGKey(0)
    k1, k2 = jax.random.split(key)
    n, num_classes = 16, 32  # e.g. batch=2 * seq=8 rows, vocab=32
    logits = jax.random.normal(k1, (n, num_classes), dtype=jnp.float32) * 2.0
    target = jax.random.randint(k2, (n,), 0, num_classes, dtype=jnp.int32)

    out = entmax_loss_module(logits, target)
    out = jax.block_until_ready(out)

    ref = _entmax_loss_ref(logits, target)
    assert jnp.allclose(out, ref, rtol=1e-4, atol=1e-4), (out, ref)
    print("KERNEL_OK")
</pallas_src>

<mosaic_0001>
module attributes {stable_mosaic.version = 11 : i64} {
  func.func @entmax15_loss_kernel(%arg0: i32, %arg1: memref<8x32xf32, #tpu.memory_space<vmem>>, %arg2: memref<1x1x8xf32, #tpu.memory_space<vmem>>) attributes {dimension_semantics = [#tpu.dimension_semantics<parallel>], iteration_bounds = array<i64: 2>, scalar_prefetch = 0 : i64, scratch_operands = 0 : i64, tpu.core_type = #tpu.core_type<tc>, window_params = [{transform_indices = @transform_0, window_bounds = array<i64: 8, 32>}, {transform_indices = @transform_1, window_bounds = array<i64: 1, 1, 8>}]} {
    %c0 = arith.constant 0 : index
    %c0_0 = arith.constant 0 : index
    %0 = vector.load %arg1[%c0, %c0_0] : memref<8x32xf32, #tpu.memory_space<vmem>>, vector<8x32xf32>
    %cst = arith.constant dense<0xFF800000> : vector<8xf32>
    %1 = vector.multi_reduction <maximumf>, %0, %cst [1] : vector<8x32xf32> to vector<8xf32>
    %2 = vector.shape_cast %1 : vector<8xf32> to vector<8x1xf32>
    %3 = vector.broadcast %2 : vector<8x1xf32> to vector<8x32xf32>
    %4 = arith.subf %0, %3 : vector<8x32xf32>
    %cst_1 = arith.constant 5.000000e-01 : f32
    %5 = vector.broadcast %cst_1 : f32 to vector<8x32xf32>
    %6 = arith.mulf %4, %5 : vector<8x32xf32>
    %cst_2 = arith.constant -1.000000e+00 : f32
    %7 = vector.broadcast %cst_2 : f32 to vector<8x1xf32>
    %cst_3 = arith.constant 0.823223292 : f32
    %c0_i32 = arith.constant 0 : i32
    %c16_i32 = arith.constant 16 : i32
    %8 = arith.addi %c0_i32, %c16_i32 : i32
    %c1_i32 = arith.constant 1 : i32
    %9:2 = scf.for %arg3 = %c0_i32 to %8 step %c1_i32 iter_args(%arg4 = %7, %arg5 = %cst_3) -> (vector<8x1xf32>, f32)  : i32 {
      %cst_17 = arith.constant 5.000000e-01 : f32
      %41 = arith.mulf %arg5, %cst_17 : f32
      %42 = vector.broadcast %41 : f32 to vector<8x1xf32>
      %43 = arith.addf %arg4, %42 : vector<8x1xf32>
      %44 = vector.broadcast %43 : vector<8x1xf32> to vector<8x32xf32>
      %45 = arith.subf %6, %44 : vector<8x32xf32>
      %cst_18 = arith.constant 0.000000e+00 : f32
      %46 = vector.broadcast %cst_18 : f32 to vector<8x32xf32>
      %47 = arith.maximumf %45, %46 : vector<8x32xf32>
      %48 = arith.mulf %47, %47 : vector<8x32xf32>
      %cst_19 = arith.constant dense<0.000000e+00> : vector<8xf32>
      %49 = vector.multi_reduction <add>, %48, %cst_19 [1] : vector<8x32xf32> to vector<8xf32>
      %50 = vector.shape_cast %49 : vector<8xf32> to vector<8x1xf32>
      %cst_20 = arith.constant 1.000000e+00 : f32
      %51 = vector.broadcast %cst_20 : f32 to vector<8x1xf32>
      %52 = arith.subf %50, %51 : vector<8x1xf32>
      %cst_21 = arith.constant 0.000000e+00 : f32
      %53 = vector.broadcast %cst_21 : f32 to vector<8x1xf32>
      %54 = arith.cmpf oge, %52, %53 : vector<8x1xf32>
      %55 = arith.select %54, %43, %arg4 : vector<8x1xi1>, vector<8x1xf32>
      scf.yield %55, %41 : vector<8x1xf32>, f32
    }
    %c0_i32_4 = arith.constant 0 : i32
    %c2_i32 = arith.constant 2 : i32
    %10 = arith.addi %c0_i32_4, %c2_i32 : i32
    %c1_i32_5 = arith.constant 1 : i32
    %11 = scf.for %arg3 = %c0_i32_4 to %10 step %c1_i32_5 iter_args(%arg4 = %9#0) -> (vector<8x1xf32>)  : i32 {
      %41 = vector.broadcast %arg4 : vector<8x1xf32> to vector<8x32xf32>
      %42 = arith.subf %6, %41 : vector<8x32xf32>
      %cst_17 = arith.constant 0.000000e+00 : f32
      %43 = vector.broadcast %cst_17 : f32 to vector<8x32xf32>
      %44 = arith.maximumf %42, %43 : vector<8x32xf32>
      %45 = arith.mulf %44, %44 : vector<8x32xf32>
      %cst_18 = arith.constant dense<0.000000e+00> : vector<8xf32>
      %46 = vector.multi_reduction <add>, %45, %cst_18 [1] : vector<8x32xf32> to vector<8xf32>
      %47 = vector.shape_cast %46 : vector<8xf32> to vector<8x1xf32>
      %cst_19 = arith.constant 1.000000e+00 : f32
      %48 = vector.broadcast %cst_19 : f32 to vector<8x1xf32>
      %49 = arith.subf %47, %48 : vector<8x1xf32>
      %cst_20 = arith.constant dense<0.000000e+00> : vector<8xf32>
      %50 = vector.multi_reduction <add>, %44, %cst_20 [1] : vector<8x32xf32> to vector<8xf32>
      %51 = vector.shape_cast %50 : vector<8xf32> to vector<8x1xf32>
      %cst_21 = arith.constant 2.000000e+00 : f32
      %52 = vector.broadcast %cst_21 : f32 to vector<8x1xf32>
      %53 = arith.mulf %52, %51 : vector<8x1xf32>
      %54 = arith.divf %49, %53 : vector<8x1xf32>
      %55 = arith.addf %arg4, %54 : vector<8x1xf32>
      scf.yield %55 : vector<8x1xf32>
    }
    %12 = vector.broadcast %11 : vector<8x1xf32> to vector<8x32xf32>
    %13 = arith.subf %6, %12 : vector<8x32xf32>
    %cst_6 = arith.constant 0.000000e+00 : f32
    %14 = vector.broadcast %cst_6 : f32 to vector<8x32xf32>
    %15 = arith.maximumf %13, %14 : vector<8x32xf32>
    %16 = arith.mulf %15, %15 : vector<8x32xf32>
    %cst_7 = arith.constant dense<0.000000e+00> : vector<8xf32>
    %17 = vector.multi_reduction <add>, %16, %cst_7 [1] : vector<8x32xf32> to vector<8xf32>
    %18 = vector.shape_cast %17 : vector<8xf32> to vector<8x1xf32>
    %19 = arith.mulf %16, %6 : vector<8x32xf32>
    %cst_8 = arith.constant dense<0.000000e+00> : vector<8xf32>
    %20 = vector.multi_reduction <add>, %19, %cst_8 [1] : vector<8x32xf32> to vector<8xf32>
    %21 = vector.shape_cast %20 : vector<8xf32> to vector<8x1xf32>
    %22 = arith.mulf %16, %15 : vector<8x32xf32>
    %cst_9 = arith.constant dense<0.000000e+00> : vector<8xf32>
    %23 = vector.multi_reduction <add>, %22, %cst_9 [1] : vector<8x32xf32> to vector<8xf32>
    %24 = vector.shape_cast %23 : vector<8xf32> to vector<8x1xf32>
    %cst_10 = arith.constant 1.000000e+00 : f32
    %25 = vector.broadcast %cst_10 : f32 to vector<8x1xf32>
    %26 = arith.divf %25, %18 : vector<8x1xf32>
    %cst_11 = arith.constant 2.000000e+00 : f32
    %27 = vector.broadcast %cst_11 : f32 to vector<8x1xf32>
    %28 = arith.mulf %27, %21 : vector<8x1xf32>
    %29 = arith.mulf %28, %26 : vector<8x1xf32>
    %30 = arith.addf %29, %2 : vector<8x1xf32>
    %31 = arith.mulf %24, %26 : vector<8x1xf32>
    %32 = math.sqrt %18 : vector<8x1xf32>
    %33 = arith.divf %31, %32 : vector<8x1xf32>
    %cst_12 = arith.constant 1.000000e+00 : f32
    %34 = vector.broadcast %cst_12 : f32 to vector<8x1xf32>
    %35 = arith.subf %34, %33 : vector<8x1xf32>
    %cst_13 = arith.constant 1.33333337 : f32
    %36 = vector.broadcast %cst_13 : f32 to vector<8x1xf32>
    %37 = arith.mulf %35, %36 : vector<8x1xf32>
    %38 = arith.addf %30, %37 : vector<8x1xf32>
    %39 = vector.shape_cast %38 : vector<8x1xf32> to vector<1x1x8xf32>
    %c0_14 = arith.constant 0 : index
    %c0_15 = arith.constant 0 : index
    %c0_16 = arith.constant 0 : index
    %40 = vector.load %arg2[%c0_14, %c0_15, %c0_16] : memref<1x1x8xf32, #tpu.memory_space<vmem>>, vector<1x1x8xf32>
    tpu.vector_store %arg2[%c0_14, %c0_15, %c0_16], %39 {strides = array<i32>} : memref<1x1x8xf32, #tpu.memory_space<vmem>>, vector<1x1x8xf32>,
    return
  }
  func.func @transform_0(%arg0: i32) -> (i32, i32) {
    %c0_i32 = arith.constant 0 : i32
    %c0_i32_0 = arith.constant 0 : i32
    return %arg0, %c0_i32 : i32, i32
  }
  func.func @transform_1(%arg0: i32) -> (i32, i32, i32) {
    %c0_i32 = arith.constant 0 : i32
    %c0_i32_0 = arith.constant 0 : i32
    %c0_i32_1 = arith.constant 0 : i32
    return %arg0, %c0_i32, %c0_i32_0 : i32, i32, i32
  }
}

</mosaic_0001>

<llo_original>
// kernel: tpu_custom_call.1
$region0: #{tpu_custom_call.1}
  #allocation0 [shape = 'u32[]', space=smem, size = 0x4, offset = 0x4, fixed_abs, tag = 'smem constant byte address 0x4 - core index']
  #allocation1 [shape = 'u32[144,128]{1,0:T(1,128)}', space=vmem, size = 0x12000, scoped, tag = 'internal scratch']
  %s0 = inlined_call_operand.hbm [shape: f32[16,32], index: 0, kind: input, shape index: {}]
  %s1 = inlined_call_operand.hbm [shape: f32[2,1,8], index: 1, kind: output, shape index: {}]
  %s2 = sld [smem:[#allocation0]]
  $region55: #{tpu_custom_call.1} parent=0
    _
  %s4 = ssub.s32 1, %s2
  %s5 = scalar_select 0, %s4, %s2
  $region1: #{tpu_custom_call.1} parent=0
    #allocation2 [shape = 'u8[8192]{0}', space=vmem, size = 0x2000, scoped, tag = 'input window, operand 0']
    #allocation3 [shape = 's32[2]{0}', space=sflag, size = 0x8, scoped, tag = 'scoped memory for tpu_custom_call.1']
    #allocation4 [shape = 's32[2]{0}', space=sflag, size = 0x8, scoped, tag = 'scoped memory for tpu_custom_call.1']
    #allocation5 [shape = 'u8[1024]{0}', space=vmem, size = 0x400, scoped, tag = 'output window, operand 0']
    %6 = vsyncpa [#allocation3], 0
    %s7 = scalar_lea.sflag [#allocation3], 1
    %8 = vsyncpa %s7, 0
    %9 = vsyncpa [#allocation4], 0
    %s10 = scalar_lea.sflag [#allocation4], 1
    %11 = vsyncpa %s10, 0
    loop: start=0, step=1, limit=4
    $region2: #{tpu_custom_call.1} parent=1 // loop_pre_header
      _
    $region3: #{tpu_custom_call.1} parent=1 // loop_header
      %s13 = sphi 0, %s17
      %p14 = scmp.ge.s32.totalorder %s13, 4
      %s23 = sphi 0, %s25
      %s26 = sphi 0, %s23
      %s27 = sphi 0, %s26
      %s43 = sphi 0, %s27
      %s49 = sphi 0, %s51
      %s52 = sphi 0, %s49
      %s53 = sphi 0, %s52
      %s69 = sphi 0, %s53
    $region4: #{tpu_custom_call.1} parent=1 // loop_header_branch
      %16 = sbr.rel (%p14) target = $region8
    $region5: #{tpu_custom_call.1} parent=1 // loop_body
      %s18 = ssub.s32 %s13, 1
      %s19 = ssub.s32 %s13, 2
      %s20 = sadd.s32 %s13, 1
      %s21 = ssub.s32 %s13, %s20
      %p22 = scmp.eq.s32.totalorder %s21, 0
      %s24 = sadd.s32 %s23, 1
      %s25 = scalar_select %p22, %s23, %s24
      %p28 = pneg %p22
      %p29 = scmp.eq.s32.totalorder %s13, 1
      %p30 = por %p28, %p29
      %p31 = scmp.ne.s32.totalorder %s23, %s26
      %p32 = scmp.eq.s32.totalorder %s13, 0
      %p33 = por %p31, %p32
      %p34 = scmp.ne.s32.totalorder %s23, %s26
      %p35 = scmp.eq.s32.totalorder %s18, 1
      %p36 = por %p34, %p35
      %p37 = scmp.ne.s32.totalorder %s26, %s27
      %p38 = scmp.eq.s32.totalorder %s18, 0
      %p39 = por %p37, %p38
      %p40 = scmp.ne.s32.totalorder %s26, %s27
      %p41 = scmp.eq.s32.totalorder %s19, 1
      %p42 = por %p40, %p41
      %p44 = scmp.ne.s32.totalorder %s27, %s43
      %p45 = scmp.eq.s32.totalorder %s19, 0
      %p46 = por %p44, %p45
      %s47 = ssub.s32 %s13, %s20
      %p48 = scmp.eq.s32.totalorder %s47, 0
      %s50 = sadd.s32 %s49, 1
      %s51 = scalar_select %p48, %s49, %s50
      %p54 = pneg %p48
      %p55 = scmp.eq.s32.totalorder %s13, 1
      %p56 = por %p54, %p55
      %p57 = scmp.ne.s32.totalorder %s49, %s52
      %p58 = scmp.eq.s32.totalorder %s13, 0
      %p59 = por %p57, %p58
      %p60 = scmp.ne.s32.totalorder %s49, %s52
      %p61 = scmp.eq.s32.totalorder %s18, 1
      %p62 = por %p60, %p61
      %p63 = scmp.ne.s32.totalorder %s52, %s53
      %p64 = scmp.eq.s32.totalorder %s18, 0
      %p65 = por %p63, %p64
      %p66 = scmp.ne.s32.totalorder %s52, %s53
      %p67 = scmp.eq.s32.totalorder %s19, 1
      %p68 = por %p66, %p67
      %p70 = scmp.ne.s32.totalorder %s53, %s69
      %p71 = scmp.eq.s32.totalorder %s19, 0
      %p72 = por %p70, %p71
      %p73 = scmp.le.s32.totalorder 1, %s13
      %p74 = scmp.lt.s32.totalorder %s13, 3
      %p75 = pnand %p73, %p74
      %p76 = pneg %p75
      // Predicated region
      $region9: #{tpu_custom_call.1} parent=5 // pred_check
        _
      $region10: #{tpu_custom_call.1} parent=5 // pred_check_branch
        %78 = sbr.rel (%p75) target = $region12
      $region11: #{tpu_custom_call.1} parent=5 // pred_region
        %s79 = ssub.s32 %s13, 1
      $region12: #{tpu_custom_call.1} parent=5 // pred_fallthru
        _
      %p80 = scmp.lt.s32.totalorder %s13, 2
      // Predicated region
      $region13: #{tpu_custom_call.1} parent=5 // pred_check
        %p81 = pneg %p80
      $region14: #{tpu_custom_call.1} parent=5 // pred_check_branch
        %83 = sbr.rel (%p81) target = $region16
      $region15: #{tpu_custom_call.1} parent=5 // pred_region
        // Predicated region
        $region17: #{tpu_custom_call.1} parent=15 // pred_check
          %p84 = pneg %p33
        $region18: #{tpu_custom_call.1} parent=15 // pred_check_branch
          %86 = sbr.rel (%p84) target = $region20
        $region19: #{tpu_custom_call.1} parent=15 // pred_region
          %s87 = sand.u32 %s23, 1
          %s88 = scalar_lea.sflag [#allocation3], %s87
          %s89 = sand.u32 %s23, 1
          %s90 = smul.addr %s89, 8
          %s91 = scalar_lea.vmem [#allocation2], %s90
          %s93 = ssub.s32 128, 128
          %94 = vsyncadd %s88, %s93
          %s95 = smul.addr %s13, 128
          %s96 = scalar_lea.hbm %s0, %s95
          %s98 = sshll.u32 %s91, 4
          %s99 = int_to_ptr.vmem [resolvable:$true] %s98
          %101 = dma.hbm_to_vmem [thread:$0]  %s96, 128, %s99, %s88
        $region20: #{tpu_custom_call.1} parent=15 // pred_fallthru
          _
      $region16: #{tpu_custom_call.1} parent=5 // pred_fallthru
        _
      %p102 = scmp.le.s32.totalorder 1, %s13
      %p103 = scmp.lt.s32.totalorder %s13, 3
      %p104 = pnand %p102, %p103
      %p105 = pneg %p104
      // Predicated region
      $region21: #{tpu_custom_call.1} parent=5 // pred_check
        _
      $region22: #{tpu_custom_call.1} parent=5 // pred_check_branch
        %107 = sbr.rel (%p104) target = $region24
      $region23: #{tpu_custom_call.1} parent=5 // pred_region
        %s108 = ssub.s32 %s13, 1
        %s109 = sand.u32 %s26, 1
        %s110 = scalar_lea.sflag [#allocation3], %s109
        %s111 = sand.u32 %s26, 1
        %s112 = smul.addr %s111, 8
        %s113 = scalar_lea.vmem [#allocation2], %s112
        // Predicated region
        $region25: #{tpu_custom_call.1} parent=23 // pred_check
          %p114 = pneg %p39
        $region26: #{tpu_custom_call.1} parent=23 // pred_check_branch
          %116 = sbr.rel (%p114) target = $region28
        $region27: #{tpu_custom_call.1} parent=23 // pred_region
          %117 = dma.done %s110, 128
        $region28: #{tpu_custom_call.1} parent=23 // pred_fallthru
          _
        %s118 = sand.u32 %s26, 1
        %s119 = scalar_lea.sflag [#allocation3], %s118
        %s120 = sand.u32 %s26, 1
        %s121 = smul.addr %s120, 8
        %s122 = scalar_lea.vmem [#allocation2], %s121
        %p123 = pneg %p39
        %p124 = pneg %p36
        %p125 = pneg %p65
        %p126 = pneg %p62
        %s127 = sand.u32 %s52, 1
        %s128 = scalar_lea.sflag [#allocation4], %s127
        %s129 = sand.u32 %s52, 1
        %s130 = scalar_lea.vmem [#allocation5], %s129
        %v131 = vld [vmem:[%s113] sm:$0xff]
        %vm132 = vcmask 261120
        %v133 = vsel %vm132, %v131, -inf
        %134 = vmax.xlane.f32.xlu0 %v133
        %v135 = vpop.xlane.xlu0 %134
        %v136 = vsub.f32 %v131, %v135
        %v137 = vmul.f32 %v136, 0.5
        loop: start=0, step=1, limit=16
        $region29: #{tpu_custom_call.1} parent=23 // loop_pre_header
          _
        $region30: #{tpu_custom_call.1} parent=23 // loop_header
          %s139 = sphi 0, %s143
          %p140 = scmp.ge.s32.totalorder %s139, 16
          %v144 = vphi -1.0, %v157
          %s145 = sphi 0.8232233, %s146
        $region31: #{tpu_custom_call.1} parent=23 // loop_header_branch
          %142 = sbr.rel (%p140) target = $region35
        $region32: #{tpu_custom_call.1} parent=23 // loop_body
          %s146 = smul.f32 %s145, 0.5
          %v147 = vstv %s146
          %v148 = vadd.f32 %v144, %v147
          %v149 = vsub.f32 %v137, %v148
          %v150 = vmax.f32 %v149, 0.0
          %v151 = vmul.f32 %v150, %v150
          %v152 = vsel %vm132, %v151, 0.0
          %153 = vadd.xlane.f32.xlu0 %v152
          %v154 = vpop.xlane.xlu0 %153
          %v155 = vsub.f32 %v154, 1.0
          %vm156 = vcmp.ge.f32.partialorder %v155, 0.0
          %v157 = vsel %vm156, %v148, %v144
        $region33: #{tpu_custom_call.1} parent=23 // loop_footer
          %s143 = sadd.s32 1, %s139
        $region34: #{tpu_custom_call.1} parent=23 // loop_footer_branch
          %138 = sbr.rel target = $region30
        $region35: #{tpu_custom_call.1} parent=23 // loop_exit
          _
        loop: start=0, step=1, limit=2
        $region36: #{tpu_custom_call.1} parent=23 // loop_pre_header
          _
        $region37: #{tpu_custom_call.1} parent=23 // loop_header
          %s159 = sphi 0, %s163
          %p160 = scmp.ge.s32.totalorder %s159, 2
          %v164 = vphi %v144, %v178
        $region38: #{tpu_custom_call.1} parent=23 // loop_header_branch
          %162 = sbr.rel (%p160) target = $region42
        $region39: #{tpu_custom_call.1} parent=23 // loop_body
          %v165 = vsub.f32 %v137, %v164
          %v166 = vmax.f32 %v165, 0.0
          %v167 = vmul.f32 %v166, %v166
          %v168 = vsel %vm132, %v167, 0.0
          %169 = vadd.xlane.f32.xlu0 %v168
          %v170 = vpop.xlane.xlu0 %169
          %v171 = vsub.f32 %v170, 1.0
          %v172 = vsel %vm132, %v166, 0.0
          %173 = vadd.xlane.f32.xlu0 %v172
          %v174 = vpop.xlane.xlu0 %173
          %v175 = vmul.f32 %v174, 2.0
          %v176 = vrcp.pop %v175
          %v177 = vmul.f32 %v171, %v176
          %v178 = vadd.f32 %v164, %v177
        $region40: #{tpu_custom_call.1} parent=23 // loop_footer
          %s163 = sadd.s32 1, %s159
        $region41: #{tpu_custom_call.1} parent=23 // loop_footer_branch
          %158 = sbr.rel target = $region37
        $region42: #{tpu_custom_call.1} parent=23 // loop_exit
          _
        %v179 = vsub.f32 %v137, %v164
        %v180 = vmax.f32 %v179, 0.0
        %v181 = vmul.f32 %v180, %v180
        %v182 = vsel %vm132, %v181, 0.0
        %183 = vadd.xlane.f32.xlu0 %v182
        %v184 = vpop.xlane.xlu0 %183
        %v185 = vmul.f32 %v181, %v137
        %v186 = vsel %vm132, %v185, 0.0
        %187 = vadd.xlane.f32.xlu0 %v186
        %v188 = vpop.xlane.xlu0 %187
        %v189 = vmul.f32 %v181, %v180
        %v190 = vsel %vm132, %v189, 0.0
        %191 = vadd.xlane.f32.xlu0 %v190
        %v192 = vpop.xlane.xlu0 %191
        %v193 = vrcp.pop %v184
        %v194 = vmul.f32 1.0, %v193
        %v195 = vmul.f32 %v188, 2.0
        %v196 = vmul.f32 %v195, %v194
        %v197 = vadd.f32 %v196, %v135
        %v198 = vmul.f32 %v192, %v194
        %v199 = vrsqrt.pop %v184
        %v200 = vmul.f32 %v184, %v199
        %vm201 = vcmp.eq.f32.partialorder %v184, inf
        %v202 = vsel %vm201, %v184, %v200
        %vm203 = vcmp.eq.f32.partialorder %v184, 0.0
        %v204 = vand.u32 %v184, 2147483648
        %v205 = vsel %vm203, %v204, %v202
        %v206 = vrcp.pop %v205
        %v207 = vmul.f32 %v198, %v206
        %v208 = vsub.f32 1.0, %v207
        %v209 = vmul.f32 %v208, 1.3333334
        %v210 = vadd.f32 %v197, %v209
        %v212 = vlaneseq
        %v213 = vand.u32 %v212, 127
        %v214 = vlaneseq
        %v215 = vshrl.u32 %v214, 7
        %v216 = vsub.s32 %v213, %v215
        %v217 = vrot.slane %v210, %v216
        %vm219 = vcmask 57344
        %220 = vst.msk [vmem:[%s130] sm:$0x1] %vm219, %v217
        %s221 = sand.u32 %s52, 1
        %s222 = scalar_lea.sflag [#allocation4], %s221
        %s223 = sand.u32 %s52, 1
        %s224 = scalar_lea.vmem [#allocation5], %s223
        // Predicated region
        $region43: #{tpu_custom_call.1} parent=23 // pred_check
          %p225 = pneg %p62
        $region44: #{tpu_custom_call.1} parent=23 // pred_check_branch
          %227 = sbr.rel (%p225) target = $region46
        $region45: #{tpu_custom_call.1} parent=23 // pred_region
          %s229 = ssub.s32 16, 16
          %230 = vsyncadd %s222, %s229
          %s231 = smul.addr %s18, 16
          %s232 = scalar_lea.hbm %s1, %s231
          %s234 = sshll.u32 %s224, 4
          %s235 = int_to_ptr.vmem [resolvable:$true] %s234
          %237 = dma.vmem_to_hbm [thread:$0]  %s235, 16, %s232, %s222
        $region46: #{tpu_custom_call.1} parent=23 // pred_fallthru
          _
      $region24: #{tpu_custom_call.1} parent=5 // pred_fallthru
        _
      %p238 = scmp.le.s32.totalorder 2, %s13
      // Predicated region
      $region47: #{tpu_custom_call.1} parent=5 // pred_check
        %p239 = pneg %p238
      $region48: #{tpu_custom_call.1} parent=5 // pred_check_branch
        %241 = sbr.rel (%p239) target = $region50
      $region49: #{tpu_custom_call.1} parent=5 // pred_region
        %s242 = ssub.s32 %s13, 2
        // Predicated region
        $region51: #{tpu_custom_call.1} parent=49 // pred_check
          %p243 = pneg %p68
        $region52: #{tpu_custom_call.1} parent=49 // pred_check_branch
          %245 = sbr.rel (%p243) target = $region54
        $region53: #{tpu_custom_call.1} parent=49 // pred_region
          %s246 = sand.u32 %s53, 1
          %s247 = scalar_lea.sflag [#allocation4], %s246
          %s248 = sand.u32 %s53, 1
          %s249 = scalar_lea.vmem [#allocation5], %s248
          %250 = dma.done %s247, 16
        $region54: #{tpu_custom_call.1} parent=49 // pred_fallthru
          _
      $region50: #{tpu_custom_call.1} parent=5 // pred_fallthru
        _
    $region6: #{tpu_custom_call.1} parent=1 // loop_footer
      %s17 = sadd.s32 1, %s13
    $region7: #{tpu_custom_call.1} parent=1 // loop_footer_branch
      %12 = sbr.rel target = $region3
    $region8: #{tpu_custom_call.1} parent=1 // loop_exit
      _
    %251 = vsyncpa [#allocation3], 1
    %s252 = scalar_lea.sflag [#allocation3], 1
    %253 = vsyncpa %s252, 1
    %254 = vsyncpa [#allocation4], 1
    %s255 = scalar_lea.sflag [#allocation4], 1
    %256 = vsyncpa %s255, 1

</llo_original>
